<compile_context>
chip_gen: v7x
topology: tpu7x:2x2x1
jax: 0.10.0
libtpu: 0.0.40
codegen_flags: <defaults>
</compile_context>

<pallas_src>
import functools

import numpy as np
import jax
import jax.numpy as jnp
from jax.experimental import pallas as pl
from jax.experimental.pallas import tpu as pltpu


DROP_PROB = 0.25
BLOCK_SIZE = 3   # NOTE: faithful crop semantics hold for block_size <= 6
                 # (PyTorch's negative-crop behaviour for bs >= 7 is degenerate)


# ----------------------------- kernel 1 --------------------------------------
def _block_mask_kernel(q_ref, bm_ref, sum_ref, *, block_size, D, H, W):
    """q_ref: (1, Dp, Hp*W) W-presummed padded mask; bm_ref: (1, D, H*W)."""
    HW = H * W
    q = q_ref[0]                                       # (Dp, Hp*W)
    # H-direction box sum: a shift of kh rows is a flat lane shift of kh*W.
    # (Static, slightly misaligned lane slices; pltpu.roll would move the
    # shift onto the otherwise-idle XLU, but slices lower unconditionally and
    # this kernel carries only ~1/(2C) of the total HBM traffic.)
    s = q[:, 0:HW]
    for kh in range(1, block_size):
        s = s + q[:, kh * W: kh * W + HW]              # running accumulator
    # D-direction box sum: sublane-offset slices summed in place.
    acc = s[0:D, :]
    for kd in range(1, block_size):
        acc = acc + s[kd:kd + D, :]
    bm = 1.0 - acc                                     # (D, H*W); unclamped, as
    bm_ref[0] = bm                                     # in the PyTorch conv port
    # Per-batch partial sum so the scale reduction never re-reads block_mask.
    row = jnp.sum(bm, axis=1, keepdims=True)           # (D, 1)  lane reduce
    sum_ref[0] = jnp.sum(row, axis=0, keepdims=True)   # (1, 1)  sublane reduce


def compute_block_mask(mask, block_size, D, H, W):
    """Returns (block_mask_flat (N, D, H*W) f32, per-batch sums (N, 1, 1) f32)."""
    N = mask.shape[0]
    pad = int(np.ceil(block_size // 2) + 1)            # faithful to the source
    mp = jnp.pad(mask, ((0, 0), (pad, pad), (pad, pad), (pad, pad)))
    Dp, Hp, _ = mp.shape[1:]
    # Layout plumbing on the tiny padded mask (a few KB): fold the W-direction
    # box sum here so the kernel's flattened (h, w) lane axis has stride
    # exactly W and its output can be stored lane-dense.
    s_w = mp[..., 0:W]
    for kw in range(1, block_size):
        s_w = s_w + mp[..., kw:kw + W]                 # (N, Dp, Hp, W)
    q = s_w.reshape(N, Dp, Hp * W)                     # free, contiguous reshape

    kernel = functools.partial(
        _block_mask_kernel, block_size=block_size, D=D, H=H, W=W)
    return pl.pallas_call(
        kernel,
        out_shape=(
            jax.ShapeDtypeStruct((N, D, H * W), jnp.float32),
            jax.ShapeDtypeStruct((N, 1, 1), jnp.float32),
        ),
        grid=(N,),
        in_specs=[pl.BlockSpec((1, Dp, Hp * W), lambda n: (n, 0, 0))],
        out_specs=(
            pl.BlockSpec((1, D, H * W), lambda n: (n, 0, 0)),
            pl.BlockSpec((1, 1, 1), lambda n: (n, 0, 0)),
        ),
        compiler_params=pltpu.CompilerParams(
            dimension_semantics=("parallel",),
            # v5e's scoped default is only 16 MiB; give large D,H,W volumes
            # explicit headroom (48 MiB fits every generation's physical VMEM).
            # TODO(synk): tile the D axis (halo via pl.ANY + make_async_copy)
            # for volumes whose padded block would not fit v7x's 64 MiB VMEM /
            # to keep both v7x TensorCores busy when N == 1.
            vmem_limit_bytes=48 * 1024 * 1024),
    )(q)


# ----------------------------- kernel 2 --------------------------------------
def _apply_kernel(scale_ref, x_ref, bm_ref, o_ref):
    # x block: (1, TC, TS); bm block: (1, 1, TS) broadcast over the TC channels.
    o_ref[...] = (x_ref[...] * bm_ref[...] * scale_ref[0]).astype(o_ref.dtype)


def _vmem_budget():
    """Per-x-block byte budget and scoped-VMEM limit for the apply kernel.

    Live VMEM ~= 2*(x tile) + 2*(out tile) + 2*(bm tile) (double buffering), so
    an ~8 MiB x tile stays comfortably under a 48 MiB scoped limit.  48 MiB is
    safe on v5e/v6e (128 MiB physical) and v7x (64 MiB physical); the larger
    tile matters most on v7x where ~3.2 TB/s HBM makes the fixed ~0.35 us/step
    overhead a ~10% tax at 4 MiB blocks.
    """
    limit = 48 * 1024 * 1024
    try:  # clamp under physical VMEM when the runtime exposes it
        cap = pltpu.get_tpu_info().vmem_capacity_bytes
        limit = min(limit, int(cap) * 3 // 4)
    except Exception:
        pass
    target = min(8 * 1024 * 1024, limit // 6)
    return target, limit


def _choose_tiles(C, S, itemsize, target_bytes):
    """Pick (tc, ts) channel/spatial tiles for the apply kernel.

    tc is a multiple of the dtype's sublane packing (8 for 4-byte, 16 for
    2-byte, 32 for 1-byte dtypes) dividing C, or C itself; ts is a multiple of
    128 dividing S, or S itself.  Prefer the largest tc with full S (so bm is
    DMA'd once per batch element); only when no channel tile fits the budget
    do we tile S, instead of letting a full-(C,S) block blow past the VMEM
    limit (most likely on v7x's 64 MiB VMEM).
    """
    sub = max(8, 32 // itemsize)
    c_tiles = sorted({C} | {tc for tc in range(sub, C, sub) if C % tc == 0},
                     reverse=True)
    s_tiles = sorted({S} | {ts for ts in range(128, S, 128) if S % ts == 0},
                     reverse=True)
    # 1) full-S, largest fitting channel tile.
    for tc in c_tiles:
        if tc * S * itemsize <= target_bytes:
            return tc, S
    # 2) smallest legal channel tile, largest fitting spatial tile.
    tc = c_tiles[-1]
    for ts in s_tiles:
        if tc * ts * itemsize <= target_bytes:
            return tc, ts
    return tc, s_tiles[-1]        # smallest legal block; still lane-dense


def apply_dropblock(x, block_mask_flat, scale):
    N, C, D, H, W = x.shape
    S = D * H * W
    x_flat = x.reshape(N, C, S)                        # free, contiguous reshapes
    bm_flat = block_mask_flat.reshape(N, 1, S)         # (N, D, H*W) -> (N, 1, S)
    # TODO(synk): for bf16/int8 x, bm could be cast to x.dtype here to halve
    # its HBM traffic; kept f32 to match the conv-reference numerics exactly.
    target_bytes, vmem_limit = _vmem_budget()
    tc, ts = _choose_tiles(C, S, x.dtype.itemsize, target_bytes)
    # Grid order: channel tiles innermost -> bm's block index (n, 0, s) is
    # constant across the inner loop, so Pallas elides its DMA (bm is read
    # once per (n, s-tile), not once per channel tile).
    grid = (N, S // ts, C // tc)
    out = pl.pallas_call(
        _apply_kernel,
        out_shape=jax.ShapeDtypeStruct((N, C, S), x.dtype),
        grid=grid,
        in_specs=[
            pl.BlockSpec(memory_space=pltpu.MemorySpace.SMEM),   # scale scalar
            pl.BlockSpec((1, tc, ts), lambda n, s, c: (n, c, s)),
            pl.BlockSpec((1, 1, ts), lambda n, s, c: (n, 0, s)),
        ],
        out_specs=pl.BlockSpec((1, tc, ts), lambda n, s, c: (n, c, s)),
        compiler_params=pltpu.CompilerParams(
            dimension_semantics=("parallel", "parallel", "parallel"),
            vmem_limit_bytes=vmem_limit),
    )(scale, x_flat, bm_flat)
    return out.reshape(N, C, D, H, W)


# ----------------------------- module-level forward ---------------------------
def dropblock3d_forward(x, key, drop_prob, block_size, training=True):
    assert x.ndim == 5, "Expected (N, C, D, H, W)"
    if not training or drop_prob == 0.0:
        return x, None
    N, C, D, H, W = x.shape
    feat_size = C                                      # matches PyTorch: x.shape[1]
    if feat_size < block_size:
        raise ValueError("input.shape[1] can not be smaller than block_size")
    assert block_size <= 6, "crop semantics only faithful for block_size <= 6"

    gamma = (drop_prob / block_size ** 2
             * (feat_size ** 2 / (feat_size - block_size + 1) ** 2))

    mask_reduction = block_size // 2
    mD, mH, mW = D - mask_reduction, H - mask_reduction, W - mask_reduction
    # TODO(synk): torch.distributions.Bernoulli RNG stream cannot be reproduced;
    # an equivalent Bernoulli(gamma) sample is drawn with jax.random instead.
    mask = jax.random.bernoulli(key, gamma, (N, mD, mH, mW)).astype(jnp.float32)

    block_mask_flat, bm_sums = compute_block_mask(mask, block_size, D, H, W)

    # block_mask.numel() / block_mask.sum() -- same (unguarded) sum==0 hazard
    # as the PyTorch source.  The per-batch partial sums come straight out of
    # kernel 1, so this reduction is over N scalars (no extra HBM pass over
    # block_mask) and kernel 2 gets a precomputed scalar (no per-step divide).
    numel = float(N * D * H * W)
    scale = (numel / jnp.sum(bm_sums)).astype(jnp.float32).reshape(1)

    out = apply_dropblock(x, block_mask_flat, scale)
    return out, mask


# ----------------------------- pure-JAX reference ------------------------------
def _reference(x, mask, block_size):
    N, C, D, H, W = x.shape
    pad = int(np.ceil(block_size // 2) + 1)
    mp = jnp.pad(mask, ((0, 0), (pad, pad), (pad, pad), (pad, pad)))
    acc = jnp.zeros((N, D, H, W), jnp.float32)
    for kd in range(block_size):
        for kh in range(block_size):
            for kw in range(block_size):
                acc = acc + mp[:, kd:kd + D, kh:kh + H, kw:kw + W]
    bm = 1.0 - acc
    out = x * bm[:, None]
    return out * (bm.size / jnp.sum(bm))


if __name__ == "__main__":
    key = jax.random.PRNGKey(0)
    kx, km = jax.random.split(key)
    N, C, D, H, W = 2, 4, 8, 16, 16
    x = jax.random.normal(kx, (N, C, D, H, W), dtype=jnp.float32)

    out, mask = dropblock3d_forward(x, km, DROP_PROB, BLOCK_SIZE, training=True)
    out = jax.block_until_ready(out)

    ref = _reference(x, mask, BLOCK_SIZE)
    np.testing.assert_allclose(np.asarray(out), np.asarray(ref),
                               rtol=1e-5, atol=1e-5)
    print("KERNEL_OK")
</pallas_src>

<mosaic_0001>
module attributes {stable_mosaic.version = 11 : i64} {
  func.func @_block_mask_kernel(%arg0: i32, %arg1: memref<1x11x304xf32, #tpu.memory_space<vmem>>, %arg2: memref<1x8x256xf32, #tpu.memory_space<vmem>>, %arg3: memref<1x1x1xf32, #tpu.memory_space<vmem>>) attributes {dimension_semantics = [#tpu.dimension_semantics<parallel>], iteration_bounds = array<i64: 2>, scalar_prefetch = 0 : i64, scratch_operands = 0 : i64, tpu.core_type = #tpu.core_type<tc>, window_params = [{transform_indices = @transform_0, window_bounds = array<i64: 1, 11, 304>}, {transform_indices = @transform_1, window_bounds = array<i64: 1, 8, 256>}, {transform_indices = @transform_2, window_bounds = array<i64: 1, 1, 1>}]} {
    %c0 = arith.constant 0 : index
    %c0_0 = arith.constant 0 : index
    %c0_1 = arith.constant 0 : index
    %0 = vector.load %arg1[%c0, %c0_0, %c0_1] : memref<1x11x304xf32, #tpu.memory_space<vmem>>, vector<1x11x304xf32>
    %1 = vector.shape_cast %0 : vector<1x11x304xf32> to vector<11x304xf32>
    %2 = vector.extract_strided_slice %1 {offsets = [0, 0], sizes = [11, 256], strides = [1, 1]} : vector<11x304xf32> to vector<11x256xf32>
    %3 = vector.extract_strided_slice %1 {offsets = [0, 16], sizes = [11, 256], strides = [1, 1]} : vector<11x304xf32> to vector<11x256xf32>
    %4 = arith.addf %2, %3 : vector<11x256xf32>
    %5 = vector.extract_strided_slice %1 {offsets = [0, 32], sizes = [11, 256], strides = [1, 1]} : vector<11x304xf32> to vector<11x256xf32>
    %6 = arith.addf %4, %5 : vector<11x256xf32>
    %7 = vector.extract_strided_slice %6 {offsets = [0, 0], sizes = [8, 256], strides = [1, 1]} : vector<11x256xf32> to vector<8x256xf32>
    %8 = vector.extract_strided_slice %6 {offsets = [1, 0], sizes = [8, 256], strides = [1, 1]} : vector<11x256xf32> to vector<8x256xf32>
    %9 = arith.addf %7, %8 : vector<8x256xf32>
    %10 = vector.extract_strided_slice %6 {offsets = [2, 0], sizes = [8, 256], strides = [1, 1]} : vector<11x256xf32> to vector<8x256xf32>
    %11 = arith.addf %9, %10 : vector<8x256xf32>
    %cst = arith.constant 1.000000e+00 : f32
    %12 = vector.broadcast %cst : f32 to vector<8x256xf32>
    %13 = arith.subf %12, %11 : vector<8x256xf32>
    %c0_2 = arith.constant 0 : index
    %c0_3 = arith.constant 0 : index
    %c0_4 = arith.constant 0 : index
    %14 = vector.load %arg2[%c0_2, %c0_3, %c0_4] : memref<1x8x256xf32, #tpu.memory_space<vmem>>, vector<1x8x256xf32>
    %15 = vector.shape_cast %14 : vector<1x8x256xf32> to vector<8x256xf32>
    %16 = vector.shape_cast %13 : vector<8x256xf32> to vector<1x8x256xf32>
    tpu.vector_store %arg2[%c0_2, %c0_3, %c0_4], %16 {strides = array<i32>} : memref<1x8x256xf32, #tpu.memory_space<vmem>>, vector<1x8x256xf32>,
    %cst_5 = arith.constant dense<0.000000e+00> : vector<8xf32>
    %17 = vector.multi_reduction <add>, %13, %cst_5 [1] : vector<8x256xf32> to vector<8xf32>
    %18 = vector.shape_cast %17 : vector<8xf32> to vector<8x1xf32>
    %cst_6 = arith.constant dense<0.000000e+00> : vector<1xf32>
    %19 = vector.multi_reduction <add>, %18, %cst_6 [0] : vector<8x1xf32> to vector<1xf32>
    %20 = vector.shape_cast %19 : vector<1xf32> to vector<1x1xf32>
    %c0_7 = arith.constant 0 : index
    %c0_8 = arith.constant 0 : index
    %c0_9 = arith.constant 0 : index
    %21 = vector.load %arg3[%c0_7, %c0_8, %c0_9] : memref<1x1x1xf32, #tpu.memory_space<vmem>>, vector<1x1x1xf32>
    %22 = vector.shape_cast %21 : vector<1x1x1xf32> to vector<1x1xf32>
    %23 = vector.shape_cast %20 : vector<1x1xf32> to vector<1x1x1xf32>
    tpu.vector_store %arg3[%c0_7, %c0_8, %c0_9], %23 {strides = array<i32>} : memref<1x1x1xf32, #tpu.memory_space<vmem>>, vector<1x1x1xf32>,
    return
  }
  func.func @transform_0(%arg0: i32) -> (i32, i32, i32) {
    %c0_i32 = arith.constant 0 : i32
    %c0_i32_0 = arith.constant 0 : i32
    %c0_i32_1 = arith.constant 0 : i32
    return %arg0, %c0_i32, %c0_i32_0 : i32, i32, i32
  }
  func.func @transform_1(%arg0: i32) -> (i32, i32, i32) {
    %c0_i32 = arith.constant 0 : i32
    %c0_i32_0 = arith.constant 0 : i32
    %c0_i32_1 = arith.constant 0 : i32
    return %arg0, %c0_i32, %c0_i32_0 : i32, i32, i32
  }
  func.func @transform_2(%arg0: i32) -> (i32, i32, i32) {
    %c0_i32 = arith.constant 0 : i32
    %c0_i32_0 = arith.constant 0 : i32
    %c0_i32_1 = arith.constant 0 : i32
    return %arg0, %c0_i32, %c0_i32_0 : i32, i32, i32
  }
}

</mosaic_0001>

<llo_original>
// kernel: tpu_custom_call.1
$region0: #{tpu_custom_call.1}
  #allocation0 [shape = 'u32[]', space=smem, size = 0x4, offset = 0x4, fixed_abs, tag = 'smem constant byte address 0x4 - core index']
  #allocation1 [shape = 'u32[144,128]{1,0:T(1,128)}', space=vmem, size = 0x12000, scoped, tag = 'internal scratch']
  %s0 = inlined_call_operand.vmem [shape: f32[2,11,304], index: 0, kind: input, shape index: {}]
  %s1 = inlined_call_operand.hbm [shape: f32[2,8,256], index: 1, kind: output, shape index: {0}]
  %s2 = inlined_call_operand.vmem [shape: f32[2,1,1], index: 2, kind: output, shape index: {1}]
  %3 = xla_tuple %s1, %s2
  %s4 = sld [smem:[#allocation0]]
  $region45: #{tpu_custom_call.1} parent=0
    _
  %s6 = ssub.s32 1, %s4
  %s7 = scalar_select 0, %s6, %s4
  $region1: #{tpu_custom_call.1} parent=0
    #allocation2 [shape = 'u8[16384]{0}', space=vmem, size = 0x4000, scoped, tag = 'output window, operand 0']
    #allocation3 [shape = 's32[2]{0}', space=sflag, size = 0x8, scoped, tag = 'scoped memory for tpu_custom_call.1']
    %8 = vsyncpa [#allocation3], 0
    %s9 = scalar_lea.sflag [#allocation3], 1
    %10 = vsyncpa %s9, 0
    loop: start=0, step=1, limit=4
    $region2: #{tpu_custom_call.1} parent=1 // loop_pre_header
      _
    $region3: #{tpu_custom_call.1} parent=1 // loop_header
      %s12 = sphi 0, %s16
      %p13 = scmp.ge.s32.totalorder %s12, 4
      %s22 = sphi 0, %s24
      %s25 = sphi 0, %s22
      %s26 = sphi 0, %s25
      %s42 = sphi 0, %s26
      %s48 = sphi 0, %s50
      %s51 = sphi 0, %s48
      %s52 = sphi 0, %s51
      %s68 = sphi 0, %s52
      %s74 = sphi 0, %s76
      %s77 = sphi 0, %s74
      %s78 = sphi 0, %s77
      %s94 = sphi 0, %s78
    $region4: #{tpu_custom_call.1} parent=1 // loop_header_branch
      %15 = sbr.rel (%p13) target = $region8
    $region5: #{tpu_custom_call.1} parent=1 // loop_body
      %s17 = ssub.s32 %s12, 1
      %s18 = ssub.s32 %s12, 2
      %s19 = sadd.s32 %s12, 1
      %s20 = ssub.s32 %s12, %s19
      %p21 = scmp.eq.s32.totalorder %s20, 0
      %s23 = sadd.s32 %s22, 1
      %s24 = scalar_select %p21, %s22, %s23
      %p27 = pneg %p21
      %p28 = scmp.eq.s32.totalorder %s12, 1
      %p29 = por %p27, %p28
      %p30 = scmp.ne.s32.totalorder %s22, %s25
      %p31 = scmp.eq.s32.totalorder %s12, 0
      %p32 = por %p30, %p31
      %p33 = scmp.ne.s32.totalorder %s22, %s25
      %p34 = scmp.eq.s32.totalorder %s17, 1
      %p35 = por %p33, %p34
      %p36 = scmp.ne.s32.totalorder %s25, %s26
      %p37 = scmp.eq.s32.totalorder %s17, 0
      %p38 = por %p36, %p37
      %p39 = scmp.ne.s32.totalorder %s25, %s26
      %p40 = scmp.eq.s32.totalorder %s18, 1
      %p41 = por %p39, %p40
      %p43 = scmp.ne.s32.totalorder %s26, %s42
      %p44 = scmp.eq.s32.totalorder %s18, 0
      %p45 = por %p43, %p44
      %s46 = ssub.s32 %s12, %s19
      %p47 = scmp.eq.s32.totalorder %s46, 0
      %s49 = sadd.s32 %s48, 1
      %s50 = scalar_select %p47, %s48, %s49
      %p53 = pneg %p47
      %p54 = scmp.eq.s32.totalorder %s12, 1
      %p55 = por %p53, %p54
      %p56 = scmp.ne.s32.totalorder %s48, %s51
      %p57 = scmp.eq.s32.totalorder %s12, 0
      %p58 = por %p56, %p57
      %p59 = scmp.ne.s32.totalorder %s48, %s51
      %p60 = scmp.eq.s32.totalorder %s17, 1
      %p61 = por %p59, %p60
      %p62 = scmp.ne.s32.totalorder %s51, %s52
      %p63 = scmp.eq.s32.totalorder %s17, 0
      %p64 = por %p62, %p63
      %p65 = scmp.ne.s32.totalorder %s51, %s52
      %p66 = scmp.eq.s32.totalorder %s18, 1
      %p67 = por %p65, %p66
      %p69 = scmp.ne.s32.totalorder %s52, %s68
      %p70 = scmp.eq.s32.totalorder %s18, 0
      %p71 = por %p69, %p70
      %s72 = ssub.s32 %s12, %s19
      %p73 = scmp.eq.s32.totalorder %s72, 0
      %s75 = sadd.s32 %s74, 1
      %s76 = scalar_select %p73, %s74, %s75
      %p79 = pneg %p73
      %p80 = scmp.eq.s32.totalorder %s12, 1
      %p81 = por %p79, %p80
      %p82 = scmp.ne.s32.totalorder %s74, %s77
      %p83 = scmp.eq.s32.totalorder %s12, 0
      %p84 = por %p82, %p83
      %p85 = scmp.ne.s32.totalorder %s74, %s77
      %p86 = scmp.eq.s32.totalorder %s17, 1
      %p87 = por %p85, %p86
      %p88 = scmp.ne.s32.totalorder %s77, %s78
      %p89 = scmp.eq.s32.totalorder %s17, 0
      %p90 = por %p88, %p89
      %p91 = scmp.ne.s32.totalorder %s77, %s78
      %p92 = scmp.eq.s32.totalorder %s18, 1
      %p93 = por %p91, %p92
      %p95 = scmp.ne.s32.totalorder %s78, %s94
      %p96 = scmp.eq.s32.totalorder %s18, 0
      %p97 = por %p95, %p96
      %p98 = scmp.le.s32.totalorder 1, %s12
      %p99 = scmp.lt.s32.totalorder %s12, 3
      %p100 = pnand %p98, %p99
      %p101 = pneg %p100
      // Predicated region
      $region9: #{tpu_custom_call.1} parent=5 // pred_check
        _
      $region10: #{tpu_custom_call.1} parent=5 // pred_check_branch
        %103 = sbr.rel (%p100) target = $region12
      $region11: #{tpu_custom_call.1} parent=5 // pred_region
        %s104 = ssub.s32 %s12, 1
      $region12: #{tpu_custom_call.1} parent=5 // pred_fallthru
        _
      %p105 = scmp.lt.s32.totalorder %s12, 2
      // Predicated region
      $region13: #{tpu_custom_call.1} parent=5 // pred_check
        %p106 = pneg %p105
      $region14: #{tpu_custom_call.1} parent=5 // pred_check_branch
        %108 = sbr.rel (%p106) target = $region16
      $region15: #{tpu_custom_call.1} parent=5 // pred_region
        // Predicated region
        $region17: #{tpu_custom_call.1} parent=15 // pred_check
          %p109 = pneg %p32
        $region18: #{tpu_custom_call.1} parent=15 // pred_check_branch
          %111 = sbr.rel (%p109) target = $region20
        $region19: #{tpu_custom_call.1} parent=15 // pred_region
          %p112 = scmp.lt.s32.totalorder %s12, 1
          %s113 = scalar_select %p112, %s12, 1
          %s114 = smul.addr %s113, 6
          %s115 = smul.addr %s114, 8
          %s116 = scalar_lea.vmem %s0, %s115
        $region20: #{tpu_custom_call.1} parent=15 // pred_fallthru
          _
      $region16: #{tpu_custom_call.1} parent=5 // pred_fallthru
        _
      %p117 = scmp.le.s32.totalorder 1, %s12
      %p118 = scmp.lt.s32.totalorder %s12, 3
      %p119 = pnand %p117, %p118
      %p120 = pneg %p119
      // Predicated region
      $region21: #{tpu_custom_call.1} parent=5 // pred_check
        _
      $region22: #{tpu_custom_call.1} parent=5 // pred_check_branch
        %122 = sbr.rel (%p119) target = $region24
      $region23: #{tpu_custom_call.1} parent=5 // pred_region
        %s123 = ssub.s32 %s12, 1
        %p124 = scmp.lt.s32.totalorder %s17, 1
        %s125 = scalar_select %p124, %s17, 1
        %s126 = smul.addr %s125, 6
        %s127 = smul.addr %s126, 8
        %s128 = scalar_lea.vmem %s0, %s127
        %p129 = pneg %p38
        %p130 = pneg %p35
        %p131 = pneg %p64
        %p132 = pneg %p61
        %s133 = sand.u32 %s51, 1
        %s134 = scalar_lea.sflag [#allocation3], %s133
        %s135 = sand.u32 %s51, 1
        %s136 = smul.addr %s135, 16
        %s137 = scalar_lea.vmem [#allocation2], %s136
        %p138 = pneg %p90
        %p139 = pneg %p87
        %p140 = scmp.lt.s32.totalorder %s17, 1
        %s141 = scalar_select %p140, %s17, 1
        %s142 = scalar_lea.vmem %s2, %s141
        %p143 = scmp.lt.s32.totalorder %s17, 1
        %s144 = scalar_select %p143, %s17, 1
        %s145 = smul.addr %s144, 6
        %s146 = smul.addr %s145, 8
        %s147 = scalar_lea.vmem %s0, %s146
        %p148 = scmp.lt.s32.totalorder %s17, 1
        %s149 = scalar_select %p148, %s17, 1
        %s150 = scalar_lea.vmem %s2, %s149
        %v151 = vld [vmem:[%s147] sm:$0xff]
        %v152 = vld [vmem:[%s147 + $0x8] sm:$0xff]
        %v153 = vld [vmem:[%s147 + $0x10] sm:$0xff]
        %v154 = vld [vmem:[%s147 + $0x18] sm:$0x7]
        %v155 = vld [vmem:[%s147 + $0x20] sm:$0x7]
        %v156 = vld [vmem:[%s147 + $0x28] sm:$0x7]
        %163 = vrot.lane.b32.xlu0 %v151, 112
        %v164 = vpop.permute.xlu0 %163
        %165 = vrot.lane.b32.xlu0 %v152, 112
        %v166 = vpop.permute.xlu0 %165
        %167 = vrot.lane.b32.xlu0 %v153, 112
        %v168 = vpop.permute.xlu0 %167
        %169 = vrot.lane.b32.xlu0 %v154, 112
        %v170 = vpop.permute.xlu0 %169
        %171 = vrot.lane.b32.xlu0 %v155, 112
        %v172 = vpop.permute.xlu0 %171
        %173 = vrot.lane.b32.xlu0 %v156, 112
        %v174 = vpop.permute.xlu0 %173
        %vm175 = vcmask 916480
        %v176 = vsel %vm175, %v164, %v166
        %v177 = vsel %vm175, %v166, %v168
        %v178 = vsel %vm175, %v170, %v172
        %v179 = vsel %vm175, %v172, %v174
        %v184 = vadd.f32 %v151, %v176
        %v185 = vadd.f32 %v152, %v177
        %v186 = vadd.f32 %v154, %v178
        %v187 = vadd.f32 %v155, %v179
        %188 = vrot.lane.b32.xlu0 %v151, 96
        %v189 = vpop.permute.xlu0 %188
        %190 = vrot.lane.b32.xlu0 %v152, 96
        %v191 = vpop.permute.xlu0 %190
        %192 = vrot.lane.b32.xlu0 %v153, 96
        %v193 = vpop.permute.xlu0 %192
        %194 = vrot.lane.b32.xlu0 %v154, 96
        %v195 = vpop.permute.xlu0 %194
        %196 = vrot.lane.b32.xlu0 %v155, 96
        %v197 = vpop.permute.xlu0 %196
        %198 = vrot.lane.b32.xlu0 %v156, 96
        %v199 = vpop.permute.xlu0 %198
        %vm200 = vcmask 785408
        %v201 = vsel %vm200, %v189, %v191
        %v202 = vsel %vm200, %v191, %v193
        %v203 = vsel %vm200, %v195, %v197
        %v204 = vsel %vm200, %v197, %v199
        %v209 = vadd.f32 %v184, %v201
        %v210 = vadd.f32 %v185, %v202
        %v211 = vadd.f32 %v186, %v203
        %v212 = vadd.f32 %v187, %v204
        %vm217 = vcmask 1046528
        %v218 = vrot.slane %v209, 1
        %v219 = vrot.slane %v211, 1
        %v220 = vsel %vm217, %v218, %v219
        %v221 = vrot.slane %v210, 1
        %v222 = vrot.slane %v212, 1
        %v223 = vsel %vm217, %v221, %v222
        %v226 = vadd.f32 %v209, %v220
        %v227 = vadd.f32 %v210, %v223
        %vm228 = vcmask 1045504
        %v229 = vrot.slane %v209, 2
        %v230 = vrot.slane %v211, 2
        %v231 = vsel %vm228, %v229, %v230
        %v232 = vrot.slane %v210, 2
        %v233 = vrot.slane %v212, 2
        %v234 = vsel %vm228, %v232, %v233
        %v237 = vadd.f32 %v226, %v231
        %v238 = vadd.f32 %v227, %v234
        %v239 = vsub.f32 1.0, %v237
        %v240 = vsub.f32 1.0, %v238
        %241 = vst [vmem:[%s137] sm:$0xff] %v239
        %242 = vst [vmem:[%s137 + $0x8] sm:$0xff] %v240
        %v243 = vadd.f32 %v239, %v240
        %244 = vadd.xlane.f32.xlu0 %v243
        %v245 = vpop.xlane.xlu0 %244
        %v246 = vrot.slane %v245, 4
        %v247 = vadd.f32 %v245, %v246
        %v248 = vrot.slane %v247, 2
        %v249 = vadd.f32 %v247, %v248
        %v250 = vrot.slane %v249, 1
        %v251 = vadd.f32 %v249, %v250
        %vm252 = vcmask 0
        %253 = vst.msk [vmem:[%s150] sm:$0x1] %vm252, %v251
        %s254 = sand.u32 %s51, 1
        %s255 = scalar_lea.sflag [#allocation3], %s254
        %s256 = sand.u32 %s51, 1
        %s257 = smul.addr %s256, 16
        %s258 = scalar_lea.vmem [#allocation2], %s257
        %p259 = scmp.lt.s32.totalorder %s17, 1
        %s260 = scalar_select %p259, %s17, 1
        %s261 = scalar_lea.vmem %s2, %s260
        // Predicated region
        $region25: #{tpu_custom_call.1} parent=23 // pred_check
          %p262 = pneg %p61
        $region26: #{tpu_custom_call.1} parent=23 // pred_check_branch
          %264 = sbr.rel (%p262) target = $region28
        $region27: #{tpu_custom_call.1} parent=23 // pred_region
          %s266 = ssub.s32 256, 256
          %267 = vsyncadd %s255, %s266
          %s268 = smul.addr %s17, 2
          %s269 = smul.addr %s268, 128
          %s270 = scalar_lea.hbm %s1, %s269
          %s272 = sshll.u32 %s258, 4
          %s273 = int_to_ptr.vmem [resolvable:$true] %s272
          %275 = dma.vmem_to_hbm [thread:$0]  %s273, 256, %s270, %s255
        $region28: #{tpu_custom_call.1} parent=23 // pred_fallthru
          _
        // Predicated region
        $region29: #{tpu_custom_call.1} parent=23 // pred_check
          %p276 = pneg %p87
        $region30: #{tpu_custom_call.1} parent=23 // pred_check_branch
          %278 = sbr.rel (%p276) target = $region32
        $region31: #{tpu_custom_call.1} parent=23 // pred_region
          _
        $region32: #{tpu_custom_call.1} parent=23 // pred_fallthru
          _
      $region24: #{tpu_custom_call.1} parent=5 // pred_fallthru
        _
      %p279 = scmp.le.s32.totalorder 2, %s12
      // Predicated region
      $region33: #{tpu_custom_call.1} parent=5 // pred_check
        %p280 = pneg %p279
      $region34: #{tpu_custom_call.1} parent=5 // pred_check_branch
        %282 = sbr.rel (%p280) target = $region36
      $region35: #{tpu_custom_call.1} parent=5 // pred_region
        %s283 = ssub.s32 %s12, 2
        // Predicated region
        $region37: #{tpu_custom_call.1} parent=35 // pred_check
          %p284 = pneg %p67
        $region38: #{tpu_custom_call.1} parent=35 // pred_check_branch
          %286 = sbr.rel (%p284) target = $region40
        $region39: #{tpu_custom_call.1} parent=35 // pred_region
          %s287 = sand.u32 %s52, 1
          %s288 = scalar_lea.sflag [#allocation3], %s287
          %s289 = sand.u32 %s52, 1
          %s290 = smul.addr %s289, 16
          %s291 = scalar_lea.vmem [#allocation2], %s290
          %292 = dma.done %s288, 256
        $region40: #{tpu_custom_call.1} parent=35 // pred_fallthru
          _
        // Predicated region
        $region41: #{tpu_custom_call.1} parent=35 // pred_check
          %p293 = pneg %p93
        $region42: #{tpu_custom_call.1} parent=35 // pred_check_branch
          %295 = sbr.rel (%p293) target = $region44
        $region43: #{tpu_custom_call.1} parent=35 // pred_region
          %p296 = scmp.lt.s32.totalorder %s18, 1
          %s297 = scalar_select %p296, %s18, 1
          %s298 = scalar_lea.vmem %s2, %s297
        $region44: #{tpu_custom_call.1} parent=35 // pred_fallthru
          _
      $region36: #{tpu_custom_call.1} parent=5 // pred_fallthru
        _
    $region6: #{tpu_custom_call.1} parent=1 // loop_footer
      %s16 = sadd.s32 1, %s12
    $region7: #{tpu_custom_call.1} parent=1 // loop_footer_branch
      %11 = sbr.rel target = $region3
    $region8: #{tpu_custom_call.1} parent=1 // loop_exit
      _
    %299 = vsyncpa [#allocation3], 1
    %s300 = scalar_lea.sflag [#allocation3], 1
    %301 = vsyncpa %s300, 1

</llo_original>
